<compile_context>
chip_gen: v7x
topology: tpu7x:2x2x1
jax: 0.10.0
libtpu: 0.0.40
codegen_flags: <defaults>
</compile_context>

<pallas_src>
import numpy as np
import jax
import jax.numpy as jnp
from jax.experimental import pallas as pl
from jax.experimental.pallas import tpu as pltpu


def _round_up(n, m):
    return ((n + m - 1) // m) * m


def _cdiv(a, b):
    return -(-a // b)


def _choose_row_tile(R, row_cap, bytes_per_row):
    """Pick an 8-aligned row tile via a rough trace-time cost model.

    cost ~ padded HBM traffic (at ~1 TB/s) + 0.35us fixed per grid step,
    with a penalty when there are too few steps to pipeline / feed both
    TensorCores on v7x.  Minimizes padding waste for awkward row counts.
    """
    best_tr, best_cost = 8, float("inf")
    for tr in range(8, max(8, row_cap) + 1, 8):
        nblk = _cdiv(R, tr)
        r_pad = nblk * tr
        t_mem = r_pad * bytes_per_row / 1.0e6     # us at ~1e6 bytes/us
        if nblk == 1:
            t_mem *= 1.5      # no DMA/compute overlap, one idle TC on v7x
        elif nblk < 4:
            t_mem *= 1.15     # shallow pipeline
        cost = t_mem + 0.35 * nblk
        if cost < best_cost:
            best_cost, best_tr = cost, tr
    return best_tr


def make_pos_embedding(max_logscale, N_freqs, logscale=True, *,
                       layout="torch", fast_trig=False,
                       row_tile=256, lane_tile=1024):
    """Returns embed(x): (B, D) -> (B, D*(1+2*N_freqs)) (torch.cat order).

    layout="plane_major" returns (1+2*N_freqs, B, D) instead, skipping the
    post-kernel reorder (recommended when the consumer can permute weights).
    fast_trig=True enables the double-angle recurrence (only used when the
    frequencies are exact doublings); not bit-exact vs. the reference.
    """
    # Frequencies are static module buffers; bake them in as Python constants.
    if logscale:
        freqs = 2.0 ** np.linspace(0.0, max_logscale, N_freqs)
    else:
        freqs = np.linspace(1.0, 2.0 ** max_logscale, N_freqs)
    freqs = tuple(float(f) for f in freqs)
    P = 1 + 2 * N_freqs  # output planes: [x, sin f0, cos f0, sin f1, ...]

    # Double-angle recurrence is only valid when each freq is exactly 2x the
    # previous one (logscale with integer exponent steps).
    doubling = (N_freqs >= 2 and
                all(abs(freqs[i + 1] - 2.0 * freqs[i]) <= 1e-9 * freqs[i + 1]
                    for i in range(N_freqs - 1)))
    use_recurrence = bool(fast_trig) and doubling

    def kernel(x_ref, o_ref):
        # x_ref: (TR, L) lane-dense slab; o_ref: (P, TR, L).
        # Each plane is a whole-tile, 128-lane-aligned store.
        x = x_ref[...]
        o_ref[0, :, :] = x                        # identity plane
        if N_freqs == 0:
            return
        # NOTE: jnp.sin/cos lower to VPU range-reduction + polynomial (not the
        # EUP); with the recurrence each extra frequency costs ~3 VPU ops.
        s = jnp.sin(freqs[0] * x)
        c = jnp.cos(freqs[0] * x)
        o_ref[1, :, :] = s
        o_ref[2, :, :] = c
        for i in range(1, N_freqs):               # static unroll over N_freqs
            if use_recurrence:
                s, c = 2.0 * s * c, c * c - s * s
            else:
                xf = freqs[i] * x
                s, c = jnp.sin(xf), jnp.cos(xf)
            o_ref[1 + 2 * i, :, :] = s
            o_ref[2 + 2 * i, :, :] = c

    def embed(x):
        B, D = x.shape
        M = B * D
        itemsize = jnp.dtype(x.dtype).itemsize

        # Lane-dense relayout: flat -> (R_pad, lanes), batch*coord on lanes.
        lanes = min(lane_tile, _round_up(M, 128))
        R = _cdiv(M, lanes)

        # Cap the row tile so double-buffered in+out blocks fit a ~24 MiB
        # VMEM budget (safe on v7x's 64 MiB VMEM, under the 32 MiB scoped
        # limit requested below), then pick the tile with the cost model.
        bytes_per_row = lanes * (1 + P) * itemsize        # in + out, one row
        budget_rows = max(8, ((24 << 20) // (2 * bytes_per_row)) // 8 * 8)
        row_cap = max(8, min(row_tile, budget_rows))
        TR = _choose_row_tile(R, row_cap, bytes_per_row)
        nblk = _cdiv(R, TR)
        R_pad = nblk * TR
        Mp = R_pad * lanes

        xf = x.reshape(-1)
        if Mp != M:
            # TODO(synk): mask the tail in-kernel instead of this pad copy
            # (input is only 1/P of traffic, so this costs a few percent).
            xf = jnp.pad(xf, (0, Mp - M))
        x2d = xf.reshape(R_pad, lanes)

        out = pl.pallas_call(
            kernel,
            out_shape=jax.ShapeDtypeStruct((P, R_pad, lanes), x.dtype),
            grid=(nblk,),
            in_specs=[pl.BlockSpec((TR, lanes), lambda i: (i, 0))],
            out_specs=pl.BlockSpec((P, TR, lanes), lambda i: (0, i, 0)),
            compiler_params=pltpu.CompilerParams(
                # TODO(synk): switch to pltpu.CORE_PARALLEL on v7x (2 TCs)
                # once validated on 2-TensorCore hardware.
                dimension_semantics=("parallel",),
                vmem_limit_bytes=32 * 1024 * 1024,
            ),
        )(x2d)

        flat = out.reshape(P, Mp)[:, :M]          # (P, B*D), plane-major
        if layout == "plane_major":
            # No extra HBM round trip; torch.cat order is recovered by
            # permuting the consumer's first weight-matrix rows instead.
            return flat.reshape(P, B, D)
        # torch.cat ordering: one fused XLA transpose copy (the interleaved
        # (B, P*D) layout has a 3-wide fastest axis, so the kernel cannot
        # store it lane-dense without XLU shuffles).
        return flat.reshape(P, B, D).transpose(1, 0, 2).reshape(B, P * D)

    return embed


def pos_embedding_ref(x, max_logscale, N_freqs, logscale=True):
    # Pure-JAX reference mirroring the PyTorch forward exactly.
    if logscale:
        freqs = 2.0 ** np.linspace(0.0, max_logscale, N_freqs)
    else:
        freqs = np.linspace(1.0, 2.0 ** max_logscale, N_freqs)
    out = [x]
    for f in freqs:
        out.append(jnp.sin(float(f) * x))
        out.append(jnp.cos(float(f) * x))
    return jnp.concatenate(out, axis=-1)


if __name__ == "__main__":
    max_logscale, N_freqs = 3, 4
    key = jax.random.PRNGKey(0)

    # 1) Small, module-consistent check (x is (B, 3)); exact trig path.
    embed = make_pos_embedding(max_logscale, N_freqs, logscale=True)
    B = 16
    x = jax.random.normal(key, (B, 3), dtype=jnp.float32)
    out = jax.block_until_ready(embed(x))
    ref = pos_embedding_ref(x, max_logscale, N_freqs, logscale=True)
    assert out.shape == (B, 3 + 6 * N_freqs), out.shape
    np.testing.assert_allclose(np.asarray(out), np.asarray(ref),
                               rtol=1e-6, atol=1e-6)

    # 2) Larger check: multi-step grid + minimal row padding (74 -> 80 rows).
    B2 = 25000
    x2 = jax.random.normal(jax.random.PRNGKey(1), (B2, 3), dtype=jnp.float32)
    out2 = jax.block_until_ready(embed(x2))
    ref2 = pos_embedding_ref(x2, max_logscale, N_freqs, logscale=True)
    np.testing.assert_allclose(np.asarray(out2), np.asarray(ref2),
                               rtol=1e-6, atol=1e-6)

    # 3) Double-angle (fast_trig) path for VALU-bound generations (v7x):
    #    same values to within a few ulp per doubling.
    embed_fast = make_pos_embedding(max_logscale, N_freqs, logscale=True,
                                    fast_trig=True)
    out3 = jax.block_until_ready(embed_fast(x2))
    np.testing.assert_allclose(np.asarray(out3), np.asarray(ref2),
                               rtol=2e-5, atol=2e-5)

    # 4) Plane-major layout (skips the post-kernel transpose entirely).
    embed_pm = make_pos_embedding(max_logscale, N_freqs, logscale=True,
                                  layout="plane_major")
    out4 = jax.block_until_ready(embed_pm(x))          # (P, B, 3)
    ref4 = np.asarray(ref).reshape(B, 1 + 2 * N_freqs, 3).transpose(1, 0, 2)
    np.testing.assert_allclose(np.asarray(out4), ref4, rtol=1e-6, atol=1e-6)

    print("KERNEL_OK")
</pallas_src>

<mosaic_0001>
module attributes {stable_mosaic.version = 11 : i64} {
  func.func @kernel(%arg0: i32, %arg1: memref<8x128xf32, #tpu.memory_space<vmem>>, %arg2: memref<9x8x128xf32, #tpu.memory_space<vmem>>) attributes {dimension_semantics = [#tpu.dimension_semantics<parallel>], iteration_bounds = array<i64: 1>, scalar_prefetch = 0 : i64, scratch_operands = 0 : i64, tpu.core_type = #tpu.core_type<tc>, window_params = [{transform_indices = @transform_0, window_bounds = array<i64: 8, 128>}, {transform_indices = @transform_1, window_bounds = array<i64: 9, 8, 128>}]} {
    %c0 = arith.constant 0 : index
    %c0_0 = arith.constant 0 : index
    %0 = vector.load %arg1[%c0, %c0_0] : memref<8x128xf32, #tpu.memory_space<vmem>>, vector<8x128xf32>
    %c0_1 = arith.constant 0 : index
    %c0_2 = arith.constant 0 : index
    %c0_3 = arith.constant 0 : index
    %1 = vector.load %arg2[%c0_1, %c0_2, %c0_3] : memref<9x8x128xf32, #tpu.memory_space<vmem>>, vector<1x8x128xf32>
    %2 = vector.shape_cast %1 : vector<1x8x128xf32> to vector<8x128xf32>
    %3 = vector.shape_cast %0 : vector<8x128xf32> to vector<1x8x128xf32>
    tpu.vector_store %arg2[%c0_1, %c0_2, %c0_3], %3 {strides = array<i32>} : memref<9x8x128xf32, #tpu.memory_space<vmem>>, vector<1x8x128xf32>,
    %cst = arith.constant 1.000000e+00 : f32
    %4 = vector.broadcast %cst : f32 to vector<8x128xf32>
    %5 = arith.mulf %4, %0 : vector<8x128xf32>
    %6 = math.sin %5 : vector<8x128xf32>
    %cst_4 = arith.constant 1.000000e+00 : f32
    %7 = vector.broadcast %cst_4 : f32 to vector<8x128xf32>
    %8 = arith.mulf %7, %0 : vector<8x128xf32>
    %9 = math.cos %8 : vector<8x128xf32>
    %c1 = arith.constant 1 : index
    %c0_5 = arith.constant 0 : index
    %c0_6 = arith.constant 0 : index
    %10 = vector.load %arg2[%c1, %c0_5, %c0_6] : memref<9x8x128xf32, #tpu.memory_space<vmem>>, vector<1x8x128xf32>
    %11 = vector.shape_cast %10 : vector<1x8x128xf32> to vector<8x128xf32>
    %12 = vector.shape_cast %6 : vector<8x128xf32> to vector<1x8x128xf32>
    tpu.vector_store %arg2[%c1, %c0_5, %c0_6], %12 {strides = array<i32>} : memref<9x8x128xf32, #tpu.memory_space<vmem>>, vector<1x8x128xf32>,
    %c2 = arith.constant 2 : index
    %c0_7 = arith.constant 0 : index
    %c0_8 = arith.constant 0 : index
    %13 = vector.load %arg2[%c2, %c0_7, %c0_8] : memref<9x8x128xf32, #tpu.memory_space<vmem>>, vector<1x8x128xf32>
    %14 = vector.shape_cast %13 : vector<1x8x128xf32> to vector<8x128xf32>
    %15 = vector.shape_cast %9 : vector<8x128xf32> to vector<1x8x128xf32>
    tpu.vector_store %arg2[%c2, %c0_7, %c0_8], %15 {strides = array<i32>} : memref<9x8x128xf32, #tpu.memory_space<vmem>>, vector<1x8x128xf32>,
    %cst_9 = arith.constant 2.000000e+00 : f32
    %16 = vector.broadcast %cst_9 : f32 to vector<8x128xf32>
    %17 = arith.mulf %16, %0 : vector<8x128xf32>
    %18 = math.sin %17 : vector<8x128xf32>
    %19 = math.cos %17 : vector<8x128xf32>
    %c3 = arith.constant 3 : index
    %c0_10 = arith.constant 0 : index
    %c0_11 = arith.constant 0 : index
    %20 = vector.load %arg2[%c3, %c0_10, %c0_11] : memref<9x8x128xf32, #tpu.memory_space<vmem>>, vector<1x8x128xf32>
    %21 = vector.shape_cast %20 : vector<1x8x128xf32> to vector<8x128xf32>
    %22 = vector.shape_cast %18 : vector<8x128xf32> to vector<1x8x128xf32>
    tpu.vector_store %arg2[%c3, %c0_10, %c0_11], %22 {strides = array<i32>} : memref<9x8x128xf32, #tpu.memory_space<vmem>>, vector<1x8x128xf32>,
    %c4 = arith.constant 4 : index
    %c0_12 = arith.constant 0 : index
    %c0_13 = arith.constant 0 : index
    %23 = vector.load %arg2[%c4, %c0_12, %c0_13] : memref<9x8x128xf32, #tpu.memory_space<vmem>>, vector<1x8x128xf32>
    %24 = vector.shape_cast %23 : vector<1x8x128xf32> to vector<8x128xf32>
    %25 = vector.shape_cast %19 : vector<8x128xf32> to vector<1x8x128xf32>
    tpu.vector_store %arg2[%c4, %c0_12, %c0_13], %25 {strides = array<i32>} : memref<9x8x128xf32, #tpu.memory_space<vmem>>, vector<1x8x128xf32>,
    %cst_14 = arith.constant 4.000000e+00 : f32
    %26 = vector.broadcast %cst_14 : f32 to vector<8x128xf32>
    %27 = arith.mulf %26, %0 : vector<8x128xf32>
    %28 = math.sin %27 : vector<8x128xf32>
    %29 = math.cos %27 : vector<8x128xf32>
    %c5 = arith.constant 5 : index
    %c0_15 = arith.constant 0 : index
    %c0_16 = arith.constant 0 : index
    %30 = vector.load %arg2[%c5, %c0_15, %c0_16] : memref<9x8x128xf32, #tpu.memory_space<vmem>>, vector<1x8x128xf32>
    %31 = vector.shape_cast %30 : vector<1x8x128xf32> to vector<8x128xf32>
    %32 = vector.shape_cast %28 : vector<8x128xf32> to vector<1x8x128xf32>
    tpu.vector_store %arg2[%c5, %c0_15, %c0_16], %32 {strides = array<i32>} : memref<9x8x128xf32, #tpu.memory_space<vmem>>, vector<1x8x128xf32>,
    %c6 = arith.constant 6 : index
    %c0_17 = arith.constant 0 : index
    %c0_18 = arith.constant 0 : index
    %33 = vector.load %arg2[%c6, %c0_17, %c0_18] : memref<9x8x128xf32, #tpu.memory_space<vmem>>, vector<1x8x128xf32>
    %34 = vector.shape_cast %33 : vector<1x8x128xf32> to vector<8x128xf32>
    %35 = vector.shape_cast %29 : vector<8x128xf32> to vector<1x8x128xf32>
    tpu.vector_store %arg2[%c6, %c0_17, %c0_18], %35 {strides = array<i32>} : memref<9x8x128xf32, #tpu.memory_space<vmem>>, vector<1x8x128xf32>,
    %cst_19 = arith.constant 8.000000e+00 : f32
    %36 = vector.broadcast %cst_19 : f32 to vector<8x128xf32>
    %37 = arith.mulf %36, %0 : vector<8x128xf32>
    %38 = math.sin %37 : vector<8x128xf32>
    %39 = math.cos %37 : vector<8x128xf32>
    %c7 = arith.constant 7 : index
    %c0_20 = arith.constant 0 : index
    %c0_21 = arith.constant 0 : index
    %40 = vector.load %arg2[%c7, %c0_20, %c0_21] : memref<9x8x128xf32, #tpu.memory_space<vmem>>, vector<1x8x128xf32>
    %41 = vector.shape_cast %40 : vector<1x8x128xf32> to vector<8x128xf32>
    %42 = vector.shape_cast %38 : vector<8x128xf32> to vector<1x8x128xf32>
    tpu.vector_store %arg2[%c7, %c0_20, %c0_21], %42 {strides = array<i32>} : memref<9x8x128xf32, #tpu.memory_space<vmem>>, vector<1x8x128xf32>,
    %c8 = arith.constant 8 : index
    %c0_22 = arith.constant 0 : index
    %c0_23 = arith.constant 0 : index
    %43 = vector.load %arg2[%c8, %c0_22, %c0_23] : memref<9x8x128xf32, #tpu.memory_space<vmem>>, vector<1x8x128xf32>
    %44 = vector.shape_cast %43 : vector<1x8x128xf32> to vector<8x128xf32>
    %45 = vector.shape_cast %39 : vector<8x128xf32> to vector<1x8x128xf32>
    tpu.vector_store %arg2[%c8, %c0_22, %c0_23], %45 {strides = array<i32>} : memref<9x8x128xf32, #tpu.memory_space<vmem>>, vector<1x8x128xf32>,
    return
  }
  func.func @transform_0(%arg0: i32) -> (i32, i32) {
    %c0_i32 = arith.constant 0 : i32
    %c0_i32_0 = arith.constant 0 : i32
    return %arg0, %c0_i32 : i32, i32
  }
  func.func @transform_1(%arg0: i32) -> (i32, i32, i32) {
    %c0_i32 = arith.constant 0 : i32
    %c0_i32_0 = arith.constant 0 : i32
    %c0_i32_1 = arith.constant 0 : i32
    return %c0_i32, %arg0, %c0_i32_0 : i32, i32, i32
  }
}

</mosaic_0001>

<llo_original>
// kernel: tpu_custom_call.1
$region0: #{tpu_custom_call.1}
  #allocation0 [shape = 'u32[]', space=smem, size = 0x4, offset = 0x4, fixed_abs, tag = 'smem constant byte address 0x4 - core index']
  #allocation1 [shape = 'u32[144,128]{1,0:T(1,128)}', space=vmem, size = 0x12000, scoped, tag = 'internal scratch']
  %s0 = inlined_call_operand.hbm [shape: f32[8,128], index: 0, kind: input, shape index: {}]
  %s1 = inlined_call_operand.hbm [shape: f32[9,8,128], index: 1, kind: output, shape index: {}]
  %s2 = sld [smem:[#allocation0]]
  $region18: #{tpu_custom_call.1} parent=0
    _
  %s4 = ssub.s32 1, %s2
  %s5 = scalar_select 0, %s4, %s2
  $region1: #{tpu_custom_call.1} parent=0
    #allocation2 [shape = 'u8[4096]{0}', space=vmem, size = 0x1000, scoped, tag = 'input window, operand 0, single buffered']
    #allocation3 [shape = 's32[1]{0}', space=sflag, size = 0x4, scoped, tag = 'scoped memory for tpu_custom_call.1']
    #allocation4 [shape = 's32[1]{0}', space=sflag, size = 0x4, scoped, tag = 'scoped memory for tpu_custom_call.1']
    #allocation5 [shape = 'u8[36864]{0}', space=vmem, size = 0x9000, scoped, tag = 'output window, operand 0, single buffered']
    %6 = vsyncpa [#allocation3], 0
    %7 = vsyncpa [#allocation4], 0
    // Predicated region
    $region2: #{tpu_custom_call.1} parent=1 // pred_check
      _
    $region3: #{tpu_custom_call.1} parent=1 // pred_check_branch
      %9 = sbr.rel (0) target = $region5
    $region4: #{tpu_custom_call.1} parent=1 // pred_region
      %s11 = ssub.s32 128, 128
      %12 = vsyncadd [#allocation3], %s11
      %s14 = sshll.u32 [#allocation2], 4
      %s15 = int_to_ptr.vmem [resolvable:$true] %s14
      %17 = dma.hbm_to_vmem [thread:$0]  %s0, 128, %s15, [#allocation3]
    $region5: #{tpu_custom_call.1} parent=1 // pred_fallthru
      _
    // Predicated region
    $region6: #{tpu_custom_call.1} parent=1 // pred_check
      _
    $region7: #{tpu_custom_call.1} parent=1 // pred_check_branch
      %19 = sbr.rel (0) target = $region9
    $region8: #{tpu_custom_call.1} parent=1 // pred_region
      %20 = dma.done [#allocation3], 128
    $region9: #{tpu_custom_call.1} parent=1 // pred_fallthru
      _
    %v21 = vld [vmem:[#allocation2] sm:$0xff]
    %22 = vst [vmem:[#allocation5] sm:$0xff] %v21
    %v23 = vand.u32 2147483647, %v21
    %vm24 = vcmp.le.f32.partialorder %v23, 0.7853982
    %vm25 = vcmp.lt.s32.totalorder %v21, 0
    %v26 = vand.u32 %v21, 2139095040
    %v27 = vshrl.u32 %v26, 23
    %v28 = vsub.s32 %v27, 127
    %v29 = vand.u32 2147483647, %v21
    %v30 = vand.u32 %v29, 8388607
    %v31 = vor.u32 %v30, 8388608
    %v32 = vsub.s32 0, %v31
    %v33 = vadd.s32 %v28, 1
    %vm34 = vcmp.gt.s32.totalorder %v33, 0
    %v35 = vsel %vm34, %v33, 0
    %v36 = vshrl.u32 %v35, 5
    %v37 = vand.u32 %v35, 31
    %v38 = vsub.s32 32, %v37
    %v39 = vshrl.u32 683565275, %v38
    %v40 = vshll.u32 683565275, %v37
    %v41 = vshrl.u32 2475754826, %v38
    %v42 = vor.u32 %v40, %v41
    %v43 = vshll.u32 2475754826, %v37
    %v44 = vshrl.u32 2131351028, %v38
    %v45 = vor.u32 %v43, %v44
    %v46 = vshll.u32 2131351028, %v37
    %v47 = vshrl.u32 2102212464, %v38
    %v48 = vor.u32 %v46, %v47
    %v49 = vshll.u32 2102212464, %v37
    %v50 = vshrl.u32 920167782, %v38
    %v51 = vor.u32 %v49, %v50
    %v52 = vshll.u32 920167782, %v37
    %v53 = vshrl.u32 1326507024, %v38
    %v54 = vor.u32 %v52, %v53
    %vm55 = vcmp.lt.s32.totalorder %v36, 1
    %vm56 = vcmp.lt.s32.totalorder %v36, 2
    %vm57 = vcmp.lt.s32.totalorder %v36, 3
    %vm58 = vcmp.lt.s32.totalorder %v36, 4
    %v59 = vsel %vm55, %v39, %v42
    %v60 = vsel %vm58, %v48, 2102212464
    %v61 = vsel %vm57, %v45, %v60
    %v62 = vsel %vm56, %v59, %v61
    %v63 = vsel %vm55, %v42, %v45
    %v64 = vsel %vm58, %v51, 920167782
    %v65 = vsel %vm57, %v48, %v64
    %v66 = vsel %vm56, %v63, %v65
    %v67 = vsel %vm55, %v45, %v48
    %v68 = vsel %vm58, %v54, 1326507024
    %v69 = vsel %vm57, %v51, %v68
    %v70 = vsel %vm56, %v67, %v69
    %v71 = vshll.u32 %v31, 8
    %v72 = vmul.u32.u64.compose %v71, %v70
    %v73 = vextract.low.u32 %v72
    %v74 = vextract.high.u32 %v72
    %v75 = vmul.u32.u64.compose %v71, %v66
    %v76 = vextract.low.u32 %v75
    %v77 = vextract.high.u32 %v75
    %v78 = vmul.u32 %v71, %v62
    %v79 = vadd.s32 %v74, %v76
    %vm80 = vc.u32 %v74, %v76
    %v81 = vadd.s32 %v77, 1
    %v82 = vsel %vm80, %v81, %v77
    %v83 = vadd.s32 %v78, %v82
    %v84 = vadd.s32 %v83, 536870912
    %v85 = vshrl.u32 %v84, 30
    %v86 = vshll.u32 %v85, 30
    %v87 = vsub.s32 %v83, %v86
    %vm88 = vcmp.lt.s32.totalorder %v87, 0
    %v89 = vsub.s32 0, %v87
    %v90 = vsel %vm88, %v89, %v87
    %v91 = vclz %v90
    %v92 = vsub.s32 %v91, 2
    %vm93 = vcmp.gt.s32.totalorder 0, %v92
    %v94 = vsel %vm93, 0, %v92
    %v95 = vsub.s32 32, %v94
    %v96 = vshll.u32 %v87, %v94
    %v97 = vshrl.u32 %v79, %v95
    %v98 = vor.u32 %v96, %v97
    %v99 = vsub.s32 4294967266, %v94
    %v100 = vadd.s32 %v99, 127
    %v101 = vshll.u32 %v100, 23
    %v102 = vor.u32 4788187, %v101
    %v103 = vand.u32 2147483647, %v102
    %v105 = vcvt.s32.f32 %v98
    %v106 = vmul.f32 %v105, %v103
    %v107 = vxor.u32 %v106, 2147483648
    %v108 = vsel %vm25, %v107, %v106
    %v109 = vsub.s32 4, %v85
    %v110 = vsel %vm25, %v109, %v85
    %v111 = vsel %vm24, %v21, %v108
    %v112 = vsel %vm24, 0, %v110
    %v113 = vcosq.f32.pop %v111
    %v114 = vsinq.f32.pop %v111
    %vm115 = vweird.f32 %v21
    %v116 = vadd.s32 %v112, 3
    %v117 = vand.u32 %v116, 3
    %vm118 = vcmp.lt.s32.totalorder %v117, 2
    %vm119 = vcmp.eq.s32.totalorder %v117, 0
    %v120 = vxor.u32 %v114, 2147483648
    %v121 = vsel %vm119, %v113, %v120
    %vm122 = vcmp.eq.s32.totalorder %v117, 2
    %v123 = vxor.u32 %v113, 2147483648
    %v124 = vsel %vm122, %v123, %v114
    %v125 = vsel %vm118, %v121, %v124
    %v126 = vsel %vm115, nan, %v125
    %v127 = vand.u32 2147483647, %v21
    %vm128 = vcmp.le.f32.partialorder %v127, 0.7853982
    %vm129 = vcmp.lt.s32.totalorder %v21, 0
    %v130 = vand.u32 %v21, 2139095040
    %v131 = vshrl.u32 %v130, 23
    %v132 = vsub.s32 %v131, 127
    %v133 = vand.u32 2147483647, %v21
    %v134 = vand.u32 %v133, 8388607
    %v135 = vor.u32 %v134, 8388608
    %v136 = vsub.s32 0, %v135
    %v137 = vadd.s32 %v132, 1
    %vm138 = vcmp.gt.s32.totalorder %v137, 0
    %v139 = vsel %vm138, %v137, 0
    %v140 = vshrl.u32 %v139, 5
    %v141 = vand.u32 %v139, 31
    %v142 = vsub.s32 32, %v141
    %v143 = vshrl.u32 683565275, %v142
    %v144 = vshll.u32 683565275, %v141
    %v145 = vshrl.u32 2475754826, %v142
    %v146 = vor.u32 %v144, %v145
    %v147 = vshll.u32 2475754826, %v141
    %v148 = vshrl.u32 2131351028, %v142
    %v149 = vor.u32 %v147, %v148
    %v150 = vshll.u32 2131351028, %v141
    %v151 = vshrl.u32 2102212464, %v142
    %v152 = vor.u32 %v150, %v151
    %v153 = vshll.u32 2102212464, %v141
    %v154 = vshrl.u32 920167782, %v142
    %v155 = vor.u32 %v153, %v154
    %v156 = vshll.u32 920167782, %v141
    %v157 = vshrl.u32 1326507024, %v142
    %v158 = vor.u32 %v156, %v157
    %vm159 = vcmp.lt.s32.totalorder %v140, 1
    %vm160 = vcmp.lt.s32.totalorder %v140, 2
    %vm161 = vcmp.lt.s32.totalorder %v140, 3
    %vm162 = vcmp.lt.s32.totalorder %v140, 4
    %v163 = vsel %vm159, %v143, %v146
    %v164 = vsel %vm162, %v152, 2102212464
    %v165 = vsel %vm161, %v149, %v164
    %v166 = vsel %vm160, %v163, %v165
    %v167 = vsel %vm159, %v146, %v149
    %v168 = vsel %vm162, %v155, 920167782
    %v169 = vsel %vm161, %v152, %v168
    %v170 = vsel %vm160, %v167, %v169
    %v171 = vsel %vm159, %v149, %v152
    %v172 = vsel %vm162, %v158, 1326507024
    %v173 = vsel %vm161, %v155, %v172
    %v174 = vsel %vm160, %v171, %v173
    %v175 = vshll.u32 %v135, 8
    %v176 = vmul.u32.u64.compose %v175, %v174
    %v177 = vextract.low.u32 %v176
    %v178 = vextract.high.u32 %v176
    %v179 = vmul.u32.u64.compose %v175, %v170
    %v180 = vextract.low.u32 %v179
    %v181 = vextract.high.u32 %v179
    %v182 = vmul.u32 %v175, %v166
    %v183 = vadd.s32 %v178, %v180
    %vm184 = vc.u32 %v178, %v180
    %v185 = vadd.s32 %v181, 1
    %v186 = vsel %vm184, %v185, %v181
    %v187 = vadd.s32 %v182, %v186
    %v188 = vadd.s32 %v187, 536870912
    %v189 = vshrl.u32 %v188, 30
    %v190 = vshll.u32 %v189, 30
    %v191 = vsub.s32 %v187, %v190
    %vm192 = vcmp.lt.s32.totalorder %v191, 0
    %v193 = vsub.s32 0, %v191
    %v194 = vsel %vm192, %v193, %v191
    %v195 = vclz %v194
    %v196 = vsub.s32 %v195, 2
    %vm197 = vcmp.gt.s32.totalorder 0, %v196
    %v198 = vsel %vm197, 0, %v196
    %v199 = vsub.s32 32, %v198
    %v200 = vshll.u32 %v191, %v198
    %v201 = vshrl.u32 %v183, %v199
    %v202 = vor.u32 %v200, %v201
    %v203 = vsub.s32 4294967266, %v198
    %v204 = vadd.s32 %v203, 127
    %v205 = vshll.u32 %v204, 23
    %v206 = vor.u32 4788187, %v205
    %v207 = vand.u32 2147483647, %v206
    %v209 = vcvt.s32.f32 %v202
    %v210 = vmul.f32 %v209, %v207
    %v211 = vxor.u32 %v210, 2147483648
    %v212 = vsel %vm129, %v211, %v210
    %v213 = vsub.s32 4, %v189
    %v214 = vsel %vm129, %v213, %v189
    %v215 = vsel %vm128, %v21, %v212
    %v216 = vsel %vm128, 0, %v214
    %v217 = vcosq.f32.pop %v215
    %v218 = vsinq.f32.pop %v215
    %vm219 = vweird.f32 %v21
    %v220 = vand.u32 %v216, 3
    %vm221 = vcmp.lt.s32.totalorder %v220, 2
    %vm222 = vcmp.eq.s32.totalorder %v220, 0
    %v223 = vxor.u32 %v218, 2147483648
    %v224 = vsel %vm222, %v217, %v223
    %vm225 = vcmp.eq.s32.totalorder %v220, 2
    %v226 = vxor.u32 %v217, 2147483648
    %v227 = vsel %vm225, %v226, %v218
    %v228 = vsel %vm221, %v224, %v227
    %v229 = vsel %vm219, nan, %v228
    %s230 = scalar_lea.vmem [#allocation5], 8
    %231 = vst [vmem:[%s230] sm:$0xff] %v126
    %s232 = scalar_lea.vmem [#allocation5], 16
    %233 = vst [vmem:[%s232] sm:$0xff] %v229
    %v234 = vmul.f32 %v21, 2.0
    %v235 = vand.u32 2147483647, %v234
    %vm236 = vcmp.le.f32.partialorder %v235, 0.7853982
    %vm237 = vcmp.lt.s32.totalorder %v234, 0
    %v238 = vand.u32 %v234, 2139095040
    %v239 = vshrl.u32 %v238, 23
    %v240 = vsub.s32 %v239, 127
    %v241 = vand.u32 2147483647, %v234
    %v242 = vand.u32 %v241, 8388607
    %v243 = vor.u32 %v242, 8388608
    %v244 = vsub.s32 0, %v243
    %v245 = vadd.s32 %v240, 1
    %vm246 = vcmp.gt.s32.totalorder %v245, 0
    %v247 = vsel %vm246, %v245, 0
    %v248 = vshrl.u32 %v247, 5
    %v249 = vand.u32 %v247, 31
    %v250 = vsub.s32 32, %v249
    %v251 = vshrl.u32 683565275, %v250
    %v252 = vshll.u32 683565275, %v249
    %v253 = vshrl.u32 2475754826, %v250
    %v254 = vor.u32 %v252, %v253
    %v255 = vshll.u32 2475754826, %v249
    %v256 = vshrl.u32 2131351028, %v250
    %v257 = vor.u32 %v255, %v256
    %v258 = vshll.u32 2131351028, %v249
    %v259 = vshrl.u32 2102212464, %v250
    %v260 = vor.u32 %v258, %v259
    %v261 = vshll.u32 2102212464, %v249
    %v262 = vshrl.u32 920167782, %v250
    %v263 = vor.u32 %v261, %v262
    %v264 = vshll.u32 920167782, %v249
    %v265 = vshrl.u32 1326507024, %v250
    %v266 = vor.u32 %v264, %v265
    %vm267 = vcmp.lt.s32.totalorder %v248, 1
    %vm268 = vcmp.lt.s32.totalorder %v248, 2
    %vm269 = vcmp.lt.s32.totalorder %v248, 3
    %vm270 = vcmp.lt.s32.totalorder %v248, 4
    %v271 = vsel %vm267, %v251, %v254
    %v272 = vsel %vm270, %v260, 2102212464
    %v273 = vsel %vm269, %v257, %v272
    %v274 = vsel %vm268, %v271, %v273
    %v275 = vsel %vm267, %v254, %v257
    %v276 = vsel %vm270, %v263, 920167782
    %v277 = vsel %vm269, %v260, %v276
    %v278 = vsel %vm268, %v275, %v277
    %v279 = vsel %vm267, %v257, %v260
    %v280 = vsel %vm270, %v266, 1326507024
    %v281 = vsel %vm269, %v263, %v280
    %v282 = vsel %vm268, %v279, %v281
    %v283 = vshll.u32 %v243, 8
    %v284 = vmul.u32.u64.compose %v283, %v282
    %v285 = vextract.low.u32 %v284
    %v286 = vextract.high.u32 %v284
    %v287 = vmul.u32.u64.compose %v283, %v278
    %v288 = vextract.low.u32 %v287
    %v289 = vextract.high.u32 %v287
    %v290 = vmul.u32 %v283, %v274
    %v291 = vadd.s32 %v286, %v288
    %vm292 = vc.u32 %v286, %v288
    %v293 = vadd.s32 %v289, 1
    %v294 = vsel %vm292, %v293, %v289
    %v295 = vadd.s32 %v290, %v294
    %v296 = vadd.s32 %v295, 536870912
    %v297 = vshrl.u32 %v296, 30
    %v298 = vshll.u32 %v297, 30
    %v299 = vsub.s32 %v295, %v298
    %vm300 = vcmp.lt.s32.totalorder %v299, 0
    %v301 = vsub.s32 0, %v299
    %v302 = vsel %vm300, %v301, %v299
    %v303 = vclz %v302
    %v304 = vsub.s32 %v303, 2
    %vm305 = vcmp.gt.s32.totalorder 0, %v304
    %v306 = vsel %vm305, 0, %v304
    %v307 = vsub.s32 32, %v306
    %v308 = vshll.u32 %v299, %v306
    %v309 = vshrl.u32 %v291, %v307
    %v310 = vor.u32 %v308, %v309
    %v311 = vsub.s32 4294967266, %v306
    %v312 = vadd.s32 %v311, 127
    %v313 = vshll.u32 %v312, 23
    %v314 = vor.u32 4788187, %v313
    %v315 = vand.u32 2147483647, %v314
    %v317 = vcvt.s32.f32 %v310
    %v318 = vmul.f32 %v317, %v315
    %v319 = vxor.u32 %v318, 2147483648
    %v320 = vsel %vm237, %v319, %v318
    %v321 = vsub.s32 4, %v297
    %v322 = vsel %vm237, %v321, %v297
    %v323 = vsel %vm236, %v234, %v320
    %v324 = vsel %vm236, 0, %v322
    %v325 = vcosq.f32.pop %v323
    %v326 = vsinq.f32.pop %v323
    %vm327 = vweird.f32 %v234
    %v328 = vadd.s32 %v324, 3
    %v329 = vand.u32 %v328, 3
    %vm330 = vcmp.lt.s32.totalorder %v329, 2
    %vm331 = vcmp.eq.s32.totalorder %v329, 0
    %v332 = vxor.u32 %v326, 2147483648
    %v333 = vsel %vm331, %v325, %v332
    %vm334 = vcmp.eq.s32.totalorder %v329, 2
    %v335 = vxor.u32 %v325, 2147483648
    %v336 = vsel %vm334, %v335, %v326
    %v337 = vsel %vm330, %v333, %v336
    %v338 = vsel %vm327, nan, %v337
    %v339 = vand.u32 2147483647, %v234
    %vm340 = vcmp.le.f32.partialorder %v339, 0.7853982
    %vm341 = vcmp.lt.s32.totalorder %v234, 0
    %v342 = vand.u32 %v234, 2139095040
    %v343 = vshrl.u32 %v342, 23
    %v344 = vsub.s32 %v343, 127
    %v345 = vand.u32 2147483647, %v234
    %v346 = vand.u32 %v345, 8388607
    %v347 = vor.u32 %v346, 8388608
    %v348 = vsub.s32 0, %v347
    %v349 = vadd.s32 %v344, 1
    %vm350 = vcmp.gt.s32.totalorder %v349, 0
    %v351 = vsel %vm350, %v349, 0
    %v352 = vshrl.u32 %v351, 5
    %v353 = vand.u32 %v351, 31
    %v354 = vsub.s32 32, %v353
    %v355 = vshrl.u32 683565275, %v354
    %v356 = vshll.u32 683565275, %v353
    %v357 = vshrl.u32 2475754826, %v354
    %v358 = vor.u32 %v356, %v357
    %v359 = vshll.u32 2475754826, %v353
    %v360 = vshrl.u32 2131351028, %v354
    %v361 = vor.u32 %v359, %v360
    %v362 = vshll.u32 2131351028, %v353
    %v363 = vshrl.u32 2102212464, %v354
    %v364 = vor.u32 %v362, %v363
    %v365 = vshll.u32 2102212464, %v353
    %v366 = vshrl.u32 920167782, %v354
    %v367 = vor.u32 %v365, %v366
    %v368 = vshll.u32 920167782, %v353
    %v369 = vshrl.u32 1326507024, %v354
    %v370 = vor.u32 %v368, %v369
    %vm371 = vcmp.lt.s32.totalorder %v352, 1
    %vm372 = vcmp.lt.s32.totalorder %v352, 2
    %vm373 = vcmp.lt.s32.totalorder %v352, 3
    %vm374 = vcmp.lt.s32.totalorder %v352, 4
    %v375 = vsel %vm371, %v355, %v358
    %v376 = vsel %vm374, %v364, 2102212464
    %v377 = vsel %vm373, %v361, %v376
    %v378 = vsel %vm372, %v375, %v377
    %v379 = vsel %vm371, %v358, %v361
    %v380 = vsel %vm374, %v367, 920167782
    %v381 = vsel %vm373, %v364, %v380
    %v382 = vsel %vm372, %v379, %v381
    %v383 = vsel %vm371, %v361, %v364
    %v384 = vsel %vm374, %v370, 1326507024
    %v385 = vsel %vm373, %v367, %v384
    %v386 = vsel %vm372, %v383, %v385
    %v387 = vshll.u32 %v347, 8
    %v388 = vmul.u32.u64.compose %v387, %v386
    %v389 = vextract.low.u32 %v388
    %v390 = vextract.high.u32 %v388
    %v391 = vmul.u32.u64.compose %v387, %v382
    %v392 = vextract.low.u32 %v391
    %v393 = vextract.high.u32 %v391
    %v394 = vmul.u32 %v387, %v378
    %v395 = vadd.s32 %v390, %v392
    %vm396 = vc.u32 %v390, %v392
    %v397 = vadd.s32 %v393, 1
    %v398 = vsel %vm396, %v397, %v393
    %v399 = vadd.s32 %v394, %v398
    %v400 = vadd.s32 %v399, 536870912
    %v401 = vshrl.u32 %v400, 30
    %v402 = vshll.u32 %v401, 30
    %v403 = vsub.s32 %v399, %v402
    %vm404 = vcmp.lt.s32.totalorder %v403, 0
    %v405 = vsub.s32 0, %v403
    %v406 = vsel %vm404, %v405, %v403
    %v407 = vclz %v406
    %v408 = vsub.s32 %v407, 2
    %vm409 = vcmp.gt.s32.totalorder 0, %v408
    %v410 = vsel %vm409, 0, %v408
    %v411 = vsub.s32 32, %v410
    %v412 = vshll.u32 %v403, %v410
    %v413 = vshrl.u32 %v395, %v411
    %v414 = vor.u32 %v412, %v413
    %v415 = vsub.s32 4294967266, %v410
    %v416 = vadd.s32 %v415, 127
    %v417 = vshll.u32 %v416, 23
    %v418 = vor.u32 4788187, %v417
    %v419 = vand.u32 2147483647, %v418
    %v421 = vcvt.s32.f32 %v414
    %v422 = vmul.f32 %v421, %v419
    %v423 = vxor.u32 %v422, 2147483648
    %v424 = vsel %vm341, %v423, %v422
    %v425 = vsub.s32 4, %v401
    %v426 = vsel %vm341, %v425, %v401
    %v427 = vsel %vm340, %v234, %v424
    %v428 = vsel %vm340, 0, %v426
    %v429 = vcosq.f32.pop %v427
    %v430 = vsinq.f32.pop %v427
    %vm431 = vweird.f32 %v234
    %v432 = vand.u32 %v428, 3
    %vm433 = vcmp.lt.s32.totalorder %v432, 2
    %vm434 = vcmp.eq.s32.totalorder %v432, 0
    %v435 = vxor.u32 %v430, 2147483648
    %v436 = vsel %vm434, %v429, %v435
    %vm437 = vcmp.eq.s32.totalorder %v432, 2
    %v438 = vxor.u32 %v429, 2147483648
    %v439 = vsel %vm437, %v438, %v430
    %v440 = vsel %vm433, %v436, %v439
    %v441 = vsel %vm431, nan, %v440
    %s442 = scalar_lea.vmem [#allocation5], 24
    %443 = vst [vmem:[%s442] sm:$0xff] %v338
    %s444 = scalar_lea.vmem [#allocation5], 32
    %445 = vst [vmem:[%s444] sm:$0xff] %v441
    %v446 = vmul.f32 %v21, 4.0
    %v447 = vand.u32 2147483647, %v446
    %vm448 = vcmp.le.f32.partialorder %v447, 0.7853982
    %vm449 = vcmp.lt.s32.totalorder %v446, 0
    %v450 = vand.u32 %v446, 2139095040
    %v451 = vshrl.u32 %v450, 23
    %v452 = vsub.s32 %v451, 127
    %v453 = vand.u32 2147483647, %v446
    %v454 = vand.u32 %v453, 8388607
    %v455 = vor.u32 %v454, 8388608
    %v456 = vsub.s32 0, %v455
    %v457 = vadd.s32 %v452, 1
    %vm458 = vcmp.gt.s32.totalorder %v457, 0
    %v459 = vsel %vm458, %v457, 0
    %v460 = vshrl.u32 %v459, 5
    %v461 = vand.u32 %v459, 31
    %v462 = vsub.s32 32, %v461
    %v463 = vshrl.u32 683565275, %v462
    %v464 = vshll.u32 683565275, %v461
    %v465 = vshrl.u32 2475754826, %v462
    %v466 = vor.u32 %v464, %v465
    %v467 = vshll.u32 2475754826, %v461
    %v468 = vshrl.u32 2131351028, %v462
    %v469 = vor.u32 %v467, %v468
    %v470 = vshll.u32 2131351028, %v461
    %v471 = vshrl.u32 2102212464, %v462
    %v472 = vor.u32 %v470, %v471
    %v473 = vshll.u32 2102212464, %v461
    %v474 = vshrl.u32 920167782, %v462
    %v475 = vor.u32 %v473, %v474
    %v476 = vshll.u32 920167782, %v461
    %v477 = vshrl.u32 1326507024, %v462
    %v478 = vor.u32 %v476, %v477
    %vm479 = vcmp.lt.s32.totalorder %v460, 1
    %vm480 = vcmp.lt.s32.totalorder %v460, 2
    %vm481 = vcmp.lt.s32.totalorder %v460, 3
    %vm482 = vcmp.lt.s32.totalorder %v460, 4
    %v483 = vsel %vm479, %v463, %v466
    %v484 = vsel %vm482, %v472, 2102212464
    %v485 = vsel %vm481, %v469, %v484
    %v486 = vsel %vm480, %v483, %v485
    %v487 = vsel %vm479, %v466, %v469
    %v488 = vsel %vm482, %v475, 920167782
    %v489 = vsel %vm481, %v472, %v488
    %v490 = vsel %vm480, %v487, %v489
    %v491 = vsel %vm479, %v469, %v472
    %v492 = vsel %vm482, %v478, 1326507024
    %v493 = vsel %vm481, %v475, %v492
    %v494 = vsel %vm480, %v491, %v493
    %v495 = vshll.u32 %v455, 8
    %v496 = vmul.u32.u64.compose %v495, %v494
    %v497 = vextract.low.u32 %v496
    %v498 = vextract.high.u32 %v496
    %v499 = vmul.u32.u64.compose %v495, %v490
    %v500 = vextract.low.u32 %v499
    %v501 = vextract.high.u32 %v499
    %v502 = vmul.u32 %v495, %v486
    %v503 = vadd.s32 %v498, %v500
    %vm504 = vc.u32 %v498, %v500
    %v505 = vadd.s32 %v501, 1
    %v506 = vsel %vm504, %v505, %v501
    %v507 = vadd.s32 %v502, %v506
    %v508 = vadd.s32 %v507, 536870912
    %v509 = vshrl.u32 %v508, 30
    %v510 = vshll.u32 %v509, 30
    %v511 = vsub.s32 %v507, %v510
    %vm512 = vcmp.lt.s32.totalorder %v511, 0
    %v513 = vsub.s32 0, %v511
    %v514 = vsel %vm512, %v513, %v511
    %v515 = vclz %v514
    %v516 = vsub.s32 %v515, 2
    %vm517 = vcmp.gt.s32.totalorder 0, %v516
    %v518 = vsel %vm517, 0, %v516
    %v519 = vsub.s32 32, %v518
    %v520 = vshll.u32 %v511, %v518
    %v521 = vshrl.u32 %v503, %v519
    %v522 = vor.u32 %v520, %v521
    %v523 = vsub.s32 4294967266, %v518
    %v524 = vadd.s32 %v523, 127
    %v525 = vshll.u32 %v524, 23
    %v526 = vor.u32 4788187, %v525
    %v527 = vand.u32 2147483647, %v526
    %v529 = vcvt.s32.f32 %v522
    %v530 = vmul.f32 %v529, %v527
    %v531 = vxor.u32 %v530, 2147483648
    %v532 = vsel %vm449, %v531, %v530
    %v533 = vsub.s32 4, %v509
    %v534 = vsel %vm449, %v533, %v509
    %v535 = vsel %vm448, %v446, %v532
    %v536 = vsel %vm448, 0, %v534
    %v537 = vcosq.f32.pop %v535
    %v538 = vsinq.f32.pop %v535
    %vm539 = vweird.f32 %v446
    %v540 = vadd.s32 %v536, 3
    %v541 = vand.u32 %v540, 3
    %vm542 = vcmp.lt.s32.totalorder %v541, 2
    %vm543 = vcmp.eq.s32.totalorder %v541, 0
    %v544 = vxor.u32 %v538, 2147483648
    %v545 = vsel %vm543, %v537, %v544
    %vm546 = vcmp.eq.s32.totalorder %v541, 2
    %v547 = vxor.u32 %v537, 2147483648
    %v548 = vsel %vm546, %v547, %v538
    %v549 = vsel %vm542, %v545, %v548
    %v550 = vsel %vm539, nan, %v549
    %v551 = vand.u32 2147483647, %v446
    %vm552 = vcmp.le.f32.partialorder %v551, 0.7853982
    %vm553 = vcmp.lt.s32.totalorder %v446, 0
    %v554 = vand.u32 %v446, 2139095040
    %v555 = vshrl.u32 %v554, 23
    %v556 = vsub.s32 %v555, 127
    %v557 = vand.u32 2147483647, %v446
    %v558 = vand.u32 %v557, 8388607
    %v559 = vor.u32 %v558, 8388608
    %v560 = vsub.s32 0, %v559
    %v561 = vadd.s32 %v556, 1
    %vm562 = vcmp.gt.s32.totalorder %v561, 0
    %v563 = vsel %vm562, %v561, 0
    %v564 = vshrl.u32 %v563, 5
    %v565 = vand.u32 %v563, 31
    %v566 = vsub.s32 32, %v565
    %v567 = vshrl.u32 683565275, %v566
    %v568 = vshll.u32 683565275, %v565
    %v569 = vshrl.u32 2475754826, %v566
    %v570 = vor.u32 %v568, %v569
    %v571 = vshll.u32 2475754826, %v565
    %v572 = vshrl.u32 2131351028, %v566
    %v573 = vor.u32 %v571, %v572
    %v574 = vshll.u32 2131351028, %v565
    %v575 = vshrl.u32 2102212464, %v566
    %v576 = vor.u32 %v574, %v575
    %v577 = vshll.u32 2102212464, %v565
    %v578 = vshrl.u32 920167782, %v566
    %v579 = vor.u32 %v577, %v578
    %v580 = vshll.u32 920167782, %v565
    %v581 = vshrl.u32 1326507024, %v566
    %v582 = vor.u32 %v580, %v581
    %vm583 = vcmp.lt.s32.totalorder %v564, 1
    %vm584 = vcmp.lt.s32.totalorder %v564, 2
    %vm585 = vcmp.lt.s32.totalorder %v564, 3
    %vm586 = vcmp.lt.s32.totalorder %v564, 4
    %v587 = vsel %vm583, %v567, %v570
    %v588 = vsel %vm586, %v576, 2102212464
    %v589 = vsel %vm585, %v573, %v588
    %v590 = vsel %vm584, %v587, %v589
    %v591 = vsel %vm583, %v570, %v573
    %v592 = vsel %vm586, %v579, 920167782
    %v593 = vsel %vm585, %v576, %v592
    %v594 = vsel %vm584, %v591, %v593
    %v595 = vsel %vm583, %v573, %v576
    %v596 = vsel %vm586, %v582, 1326507024
    %v597 = vsel %vm585, %v579, %v596
    %v598 = vsel %vm584, %v595, %v597
    %v599 = vshll.u32 %v559, 8
    %v600 = vmul.u32.u64.compose %v599, %v598
    %v601 = vextract.low.u32 %v600
    %v602 = vextract.high.u32 %v600
    %v603 = vmul.u32.u64.compose %v599, %v594
    %v604 = vextract.low.u32 %v603
    %v605 = vextract.high.u32 %v603
    %v606 = vmul.u32 %v599, %v590
    %v607 = vadd.s32 %v602, %v604
    %vm608 = vc.u32 %v602, %v604
    %v609 = vadd.s32 %v605, 1
    %v610 = vsel %vm608, %v609, %v605
    %v611 = vadd.s32 %v606, %v610
    %v612 = vadd.s32 %v611, 536870912
    %v613 = vshrl.u32 %v612, 30
    %v614 = vshll.u32 %v613, 30
    %v615 = vsub.s32 %v611, %v614
    %vm616 = vcmp.lt.s32.totalorder %v615, 0
    %v617 = vsub.s32 0, %v615
    %v618 = vsel %vm616, %v617, %v615
    %v619 = vclz %v618
    %v620 = vsub.s32 %v619, 2
    %vm621 = vcmp.gt.s32.totalorder 0, %v620
    %v622 = vsel %vm621, 0, %v620
    %v623 = vsub.s32 32, %v622
    %v624 = vshll.u32 %v615, %v622
    %v625 = vshrl.u32 %v607, %v623
    %v626 = vor.u32 %v624, %v625
    %v627 = vsub.s32 4294967266, %v622
    %v628 = vadd.s32 %v627, 127
    %v629 = vshll.u32 %v628, 23
    %v630 = vor.u32 4788187, %v629
    %v631 = vand.u32 2147483647, %v630
    %v633 = vcvt.s32.f32 %v626
    %v634 = vmul.f32 %v633, %v631
    %v635 = vxor.u32 %v634, 2147483648
    %v636 = vsel %vm553, %v635, %v634
    %v637 = vsub.s32 4, %v613
    %v638 = vsel %vm553, %v637, %v613
    %v639 = vsel %vm552, %v446, %v636
    %v640 = vsel %vm552, 0, %v638
    %v641 = vcosq.f32.pop %v639
    %v642 = vsinq.f32.pop %v639
    %vm643 = vweird.f32 %v446
    %v644 = vand.u32 %v640, 3
    %vm645 = vcmp.lt.s32.totalorder %v644, 2
    %vm646 = vcmp.eq.s32.totalorder %v644, 0
    %v647 = vxor.u32 %v642, 2147483648
    %v648 = vsel %vm646, %v641, %v647
    %vm649 = vcmp.eq.s32.totalorder %v644, 2
    %v650 = vxor.u32 %v641, 2147483648
    %v651 = vsel %vm649, %v650, %v642
    %v652 = vsel %vm645, %v648, %v651
    %v653 = vsel %vm643, nan, %v652
    %s654 = scalar_lea.vmem [#allocation5], 40
    %655 = vst [vmem:[%s654] sm:$0xff] %v550
    %s656 = scalar_lea.vmem [#allocation5], 48
    %657 = vst [vmem:[%s656] sm:$0xff] %v653
    %v658 = vmul.f32 %v21, 8.0
    %v659 = vand.u32 2147483647, %v658
    %vm660 = vcmp.le.f32.partialorder %v659, 0.7853982
    %vm661 = vcmp.lt.s32.totalorder %v658, 0
    %v662 = vand.u32 %v658, 2139095040
    %v663 = vshrl.u32 %v662, 23
    %v664 = vsub.s32 %v663, 127
    %v665 = vand.u32 2147483647, %v658
    %v666 = vand.u32 %v665, 8388607
    %v667 = vor.u32 %v666, 8388608
    %v668 = vsub.s32 0, %v667
    %v669 = vadd.s32 %v664, 1
    %vm670 = vcmp.gt.s32.totalorder %v669, 0
    %v671 = vsel %vm670, %v669, 0
    %v672 = vshrl.u32 %v671, 5
    %v673 = vand.u32 %v671, 31
    %v674 = vsub.s32 32, %v673
    %v675 = vshrl.u32 683565275, %v674
    %v676 = vshll.u32 683565275, %v673
    %v677 = vshrl.u32 2475754826, %v674
    %v678 = vor.u32 %v676, %v677
    %v679 = vshll.u32 2475754826, %v673
    %v680 = vshrl.u32 2131351028, %v674
    %v681 = vor.u32 %v679, %v680
    %v682 = vshll.u32 2131351028, %v673
    %v683 = vshrl.u32 2102212464, %v674
    %v684 = vor.u32 %v682, %v683
    %v685 = vshll.u32 2102212464, %v673
    %v686 = vshrl.u32 920167782, %v674
    %v687 = vor.u32 %v685, %v686
    %v688 = vshll.u32 920167782, %v673
    %v689 = vshrl.u32 1326507024, %v674
    %v690 = vor.u32 %v688, %v689
    %vm691 = vcmp.lt.s32.totalorder %v672, 1
    %vm692 = vcmp.lt.s32.totalorder %v672, 2
    %vm693 = vcmp.lt.s32.totalorder %v672, 3
    %vm694 = vcmp.lt.s32.totalorder %v672, 4
    %v695 = vsel %vm691, %v675, %v678
    %v696 = vsel %vm694, %v684, 2102212464
    %v697 = vsel %vm693, %v681, %v696
    %v698 = vsel %vm692, %v695, %v697
    %v699 = vsel %vm691, %v678, %v681
    %v700 = vsel %vm694, %v687, 920167782
    %v701 = vsel %vm693, %v684, %v700
    %v702 = vsel %vm692, %v699, %v701
    %v703 = vsel %vm691, %v681, %v684
    %v704 = vsel %vm694, %v690, 1326507024
    %v705 = vsel %vm693, %v687, %v704
    %v706 = vsel %vm692, %v703, %v705
    %v707 = vshll.u32 %v667, 8
    %v708 = vmul.u32.u64.compose %v707, %v706
    %v709 = vextract.low.u32 %v708
    %v710 = vextract.high.u32 %v708
    %v711 = vmul.u32.u64.compose %v707, %v702
    %v712 = vextract.low.u32 %v711
    %v713 = vextract.high.u32 %v711
    %v714 = vmul.u32 %v707, %v698
    %v715 = vadd.s32 %v710, %v712
    %vm716 = vc.u32 %v710, %v712
    %v717 = vadd.s32 %v713, 1
    %v718 = vsel %vm716, %v717, %v713
    %v719 = vadd.s32 %v714, %v718
    %v720 = vadd.s32 %v719, 536870912
    %v721 = vshrl.u32 %v720, 30
    %v722 = vshll.u32 %v721, 30
    %v723 = vsub.s32 %v719, %v722
    %vm724 = vcmp.lt.s32.totalorder %v723, 0
    %v725 = vsub.s32 0, %v723
    %v726 = vsel %vm724, %v725, %v723
    %v727 = vclz %v726
    %v728 = vsub.s32 %v727, 2
    %vm729 = vcmp.gt.s32.totalorder 0, %v728
    %v730 = vsel %vm729, 0, %v728
    %v731 = vsub.s32 32, %v730
    %v732 = vshll.u32 %v723, %v730
    %v733 = vshrl.u32 %v715, %v731
    %v734 = vor.u32 %v732, %v733
    %v735 = vsub.s32 4294967266, %v730
    %v736 = vadd.s32 %v735, 127
    %v737 = vshll.u32 %v736, 23
    %v738 = vor.u32 4788187, %v737
    %v739 = vand.u32 2147483647, %v738
    %v741 = vcvt.s32.f32 %v734
    %v742 = vmul.f32 %v741, %v739
    %v743 = vxor.u32 %v742, 2147483648
    %v744 = vsel %vm661, %v743, %v742
    %v745 = vsub.s32 4, %v721
    %v746 = vsel %vm661, %v745, %v721
    %v747 = vsel %vm660, %v658, %v744
    %v748 = vsel %vm660, 0, %v746
    %v749 = vcosq.f32.pop %v747
    %v750 = vsinq.f32.pop %v747
    %vm751 = vweird.f32 %v658
    %v752 = vadd.s32 %v748, 3
    %v753 = vand.u32 %v752, 3
    %vm754 = vcmp.lt.s32.totalorder %v753, 2
    %vm755 = vcmp.eq.s32.totalorder %v753, 0
    %v756 = vxor.u32 %v750, 2147483648
    %v757 = vsel %vm755, %v749, %v756
    %vm758 = vcmp.eq.s32.totalorder %v753, 2
    %v759 = vxor.u32 %v749, 2147483648
    %v760 = vsel %vm758, %v759, %v750
    %v761 = vsel %vm754, %v757, %v760
    %v762 = vsel %vm751, nan, %v761
    %v763 = vand.u32 2147483647, %v658
    %vm764 = vcmp.le.f32.partialorder %v763, 0.7853982
    %vm765 = vcmp.lt.s32.totalorder %v658, 0
    %v766 = vand.u32 %v658, 2139095040
    %v767 = vshrl.u32 %v766, 23
    %v768 = vsub.s32 %v767, 127
    %v769 = vand.u32 2147483647, %v658
    %v770 = vand.u32 %v769, 8388607
    %v771 = vor.u32 %v770, 8388608
    %v772 = vsub.s32 0, %v771
    %v773 = vadd.s32 %v768, 1
    %vm774 = vcmp.gt.s32.totalorder %v773, 0
    %v775 = vsel %vm774, %v773, 0
    %v776 = vshrl.u32 %v775, 5
    %v777 = vand.u32 %v775, 31
    %v778 = vsub.s32 32, %v777
    %v779 = vshrl.u32 683565275, %v778
    %v780 = vshll.u32 683565275, %v777
    %v781 = vshrl.u32 2475754826, %v778
    %v782 = vor.u32 %v780, %v781
    %v783 = vshll.u32 2475754826, %v777
    %v784 = vshrl.u32 2131351028, %v778
    %v785 = vor.u32 %v783, %v784
    %v786 = vshll.u32 2131351028, %v777
    %v787 = vshrl.u32 2102212464, %v778
    %v788 = vor.u32 %v786, %v787
    %v789 = vshll.u32 2102212464, %v777
    %v790 = vshrl.u32 920167782, %v778
    %v791 = vor.u32 %v789, %v790
    %v792 = vshll.u32 920167782, %v777
    %v793 = vshrl.u32 1326507024, %v778
    %v794 = vor.u32 %v792, %v793
    %vm795 = vcmp.lt.s32.totalorder %v776, 1
    %vm796 = vcmp.lt.s32.totalorder %v776, 2
    %vm797 = vcmp.lt.s32.totalorder %v776, 3
    %vm798 = vcmp.lt.s32.totalorder %v776, 4
    %v799 = vsel %vm795, %v779, %v782
    %v800 = vsel %vm798, %v788, 2102212464
    %v801 = vsel %vm797, %v785, %v800
    %v802 = vsel %vm796, %v799, %v801
    %v803 = vsel %vm795, %v782, %v785
    %v804 = vsel %vm798, %v791, 920167782
    %v805 = vsel %vm797, %v788, %v804
    %v806 = vsel %vm796, %v803, %v805
    %v807 = vsel %vm795, %v785, %v788
    %v808 = vsel %vm798, %v794, 1326507024
    %v809 = vsel %vm797, %v791, %v808
    %v810 = vsel %vm796, %v807, %v809
    %v811 = vshll.u32 %v771, 8
    %v812 = vmul.u32.u64.compose %v811, %v810
    %v813 = vextract.low.u32 %v812
    %v814 = vextract.high.u32 %v812
    %v815 = vmul.u32.u64.compose %v811, %v806
    %v816 = vextract.low.u32 %v815
    %v817 = vextract.high.u32 %v815
    %v818 = vmul.u32 %v811, %v802
    %v819 = vadd.s32 %v814, %v816
    %vm820 = vc.u32 %v814, %v816
    %v821 = vadd.s32 %v817, 1
    %v822 = vsel %vm820, %v821, %v817
    %v823 = vadd.s32 %v818, %v822
    %v824 = vadd.s32 %v823, 536870912
    %v825 = vshrl.u32 %v824, 30
    %v826 = vshll.u32 %v825, 30
    %v827 = vsub.s32 %v823, %v826
    %vm828 = vcmp.lt.s32.totalorder %v827, 0
    %v829 = vsub.s32 0, %v827
    %v830 = vsel %vm828, %v829, %v827
    %v831 = vclz %v830
    %v832 = vsub.s32 %v831, 2
    %vm833 = vcmp.gt.s32.totalorder 0, %v832
    %v834 = vsel %vm833, 0, %v832
    %v835 = vsub.s32 32, %v834
    %v836 = vshll.u32 %v827, %v834
    %v837 = vshrl.u32 %v819, %v835
    %v838 = vor.u32 %v836, %v837
    %v839 = vsub.s32 4294967266, %v834
    %v840 = vadd.s32 %v839, 127
    %v841 = vshll.u32 %v840, 23
    %v842 = vor.u32 4788187, %v841
    %v843 = vand.u32 2147483647, %v842
    %v845 = vcvt.s32.f32 %v838
    %v846 = vmul.f32 %v845, %v843
    %v847 = vxor.u32 %v846, 2147483648
    %v848 = vsel %vm765, %v847, %v846
    %v849 = vsub.s32 4, %v825
    %v850 = vsel %vm765, %v849, %v825
    %v851 = vsel %vm764, %v658, %v848
    %v852 = vsel %vm764, 0, %v850
    %v853 = vcosq.f32.pop %v851
    %v854 = vsinq.f32.pop %v851
    %vm855 = vweird.f32 %v658
    %v856 = vand.u32 %v852, 3
    %vm857 = vcmp.lt.s32.totalorder %v856, 2
    %vm858 = vcmp.eq.s32.totalorder %v856, 0
    %v859 = vxor.u32 %v854, 2147483648
    %v860 = vsel %vm858, %v853, %v859
    %vm861 = vcmp.eq.s32.totalorder %v856, 2
    %v862 = vxor.u32 %v853, 2147483648
    %v863 = vsel %vm861, %v862, %v854
    %v864 = vsel %vm857, %v860, %v863
    %v865 = vsel %vm855, nan, %v864
    %s866 = scalar_lea.vmem [#allocation5], 56
    %867 = vst [vmem:[%s866] sm:$0xff] %v762
    %s868 = scalar_lea.vmem [#allocation5], 64
    %869 = vst [vmem:[%s868] sm:$0xff] %v865
    // Predicated region
    $region10: #{tpu_custom_call.1} parent=1 // pred_check
      _
    $region11: #{tpu_custom_call.1} parent=1 // pred_check_branch
      %871 = sbr.rel (0) target = $region13
    $region12: #{tpu_custom_call.1} parent=1 // pred_region
      %s873 = ssub.s32 1152, 1152
      %874 = vsyncadd [#allocation4], %s873
      %s875 = sshll.u32 [#allocation5], 4
      %s876 = int_to_ptr.vmem [resolvable:$true] %s875
      %881 = dma.vmem_to_hbm [thread:$0]  %s876, 1152, %s1, [#allocation4], 128, 128, 8
    $region13: #{tpu_custom_call.1} parent=1 // pred_fallthru
      _
    // Predicated region
    $region14: #{tpu_custom_call.1} parent=1 // pred_check
      _
    $region15: #{tpu_custom_call.1} parent=1 // pred_check_branch
      %883 = sbr.rel (0) target = $region17
    $region16: #{tpu_custom_call.1} parent=1 // pred_region
      %884 = dma.done [#allocation4], 1152
    $region17: #{tpu_custom_call.1} parent=1 // pred_fallthru
      _
    %885 = vsyncpa [#allocation3], 1
    %886 = vsyncpa [#allocation4], 1

</llo_original>
